<compile_context>
chip_gen: v7x
topology: tpu7x:2x2x1
jax: 0.10.0
libtpu: 0.0.40
codegen_flags: <defaults>
</compile_context>

<pallas_src>
import jax
import jax.numpy as jnp
from jax.experimental import pallas as pl
from jax.experimental.pallas import tpu as pltpu


MM_DTYPE = jnp.bfloat16   # MXU operand dtype (v6e/v7x fast path); accumulation is f32


def _round_up(x, m):
    return (x + m - 1) // m * m


# ------------------------------- fused kernel ------------------------------ #

def _fused_ve_kernel(x_ref, cw_ref, cb_ref, lw_ref, lb_ref,
                     pf_ref, avg_ref, lin_ref, xbuf_ref):
    """Stem-conv matmul + AvgPool(7x7) + Linear head, all in one VMEM pass.

    x_ref   : (B, S, K)   f32  unpadded im2col patches (pad + bf16 cast done here)
    cw_ref  : (Kp, Cf)    bf16 flattened conv weight, (Cin, kh, kw) ordering (rows >= K zero)
    cb_ref  : (1, Cf)     f32  conv bias
    lw_ref  : (Cf, Np)    bf16 linear weight (columns >= OUT are zero)
    lb_ref  : (1, Np)     f32  linear bias   (columns >= OUT are zero)
    pf_ref  : (B, S, Cf)  f32  patch features, channels-last
    avg_ref : (B, Cf)     f32  pooled features
    lin_ref : (B, OUT)    f32  linear head output (true width, no wrapper slice)
    xbuf_ref: (B, Sp, Kp) f32  zero-padded patch staging buffer (VMEM scratch)
    """
    B, Sp, Kp = xbuf_ref.shape
    _, S, K = x_ref.shape
    Cf = pf_ref.shape[2]
    OUT = lin_ref.shape[1]

    # One-time zero-pad S->Sp (sublanes) and K->Kp (lanes), entirely in VMEM.
    xbuf_ref[...] = jnp.zeros_like(xbuf_ref)
    xbuf_ref[:, :S, :K] = x_ref[...]

    # Stem conv as one lane-dense MXU matmul (bf16 operands, f32 accumulation),
    # bias added in f32.  Reshape (B, Sp, Kp) -> (B*Sp, Kp) is layout-free since
    # Sp % 8 == 0.
    x2d = xbuf_ref[...].reshape(B * Sp, Kp).astype(MM_DTYPE)
    mm = jnp.dot(x2d, cw_ref[...],
                 preferred_element_type=jnp.float32) + cb_ref[...]      # (B*Sp, Cf) f32
    mmb = mm.reshape(B, Sp, Cf)                                         # layout-free

    # INVARIANT: rows S..Sp of mmb hold the conv bias (zero patches @ W + b),
    # NOT zeros.  They must never leave the kernel — everything below slices to
    # the first S rows before storing or reducing.
    valid = mmb[:, :S, :]                                               # (B, S, Cf)
    pf_ref[...] = valid

    # AvgPool2d(7) == adaptive avgpool(1) == mean over the S=49 spatial slots:
    # a single f32 sublane reduce on the otherwise-idle XLU + constant 1/S scale.
    avg = jnp.sum(valid, axis=1) * (1.0 / S)                            # (B, Cf) f32
    avg_ref[...] = avg

    # Linear head straight from VMEM (no HBM round-trip of avg); the lane-padded
    # matmul result is sliced back to the true OUT=121 columns before the store.
    lin = jnp.dot(avg.astype(lw_ref.dtype), lw_ref[...],
                  preferred_element_type=jnp.float32) + lb_ref[...]     # (B, Np)
    lin_ref[...] = lin[:, :OUT]


# ------------------------------ pallas_call glue --------------------------- #

def _full_spec(shape):
    # single-block spec: the block is the whole (small) array in VMEM
    return pl.BlockSpec(shape, lambda i: (0,) * len(shape))


def pallas_visual_extractor(patches, cw, cb, lw, lb, *, out_features):
    B, S, K = patches.shape
    Kp, Cf = cw.shape
    Sp = _round_up(S, 8)
    # Total resident VMEM footprint is <0.3 MiB — no tiling/grid steps needed on
    # any generation (incl. v7x's 64 MiB limit).
    return pl.pallas_call(
        _fused_ve_kernel,
        grid=(1,),
        in_specs=[_full_spec(patches.shape), _full_spec(cw.shape), _full_spec(cb.shape),
                  _full_spec(lw.shape), _full_spec(lb.shape)],
        out_specs=[_full_spec((B, S, Cf)), _full_spec((B, Cf)),
                   _full_spec((B, out_features))],
        out_shape=(
            jax.ShapeDtypeStruct((B, S, Cf), jnp.float32),
            jax.ShapeDtypeStruct((B, Cf), jnp.float32),
            jax.ShapeDtypeStruct((B, out_features), jnp.float32),
        ),
        scratch_shapes=[pltpu.VMEM((B, Sp, Kp), jnp.float32)],
        compiler_params=pltpu.CompilerParams(dimension_semantics=("arbitrary",)),
    )(patches, cw, cb, lw, lb)


# ------------------------------ weight prep -------------------------------- #

def prepare_params(params):
    """One-time weight layout prep, hoisted out of the per-call jitted forward:
    flatten/transpose, zero-pad to lane-dense shapes, cast MXU operands to bf16."""
    Cf, Cin, kh, kw = params["conv_w"].shape
    K = Cin * kh * kw
    Kp = _round_up(K, 128)                       # lane-dense contraction dim
    OUT = params["lin_w"].shape[0]
    Np = _round_up(OUT, 128)                     # lane-dense Linear matmul width

    cw = params["conv_w"].reshape(Cf, K).T                       # (K, Cf), (Cin,kh,kw)
    cw = jnp.pad(cw, ((0, Kp - K), (0, 0))).astype(MM_DTYPE)     # (Kp, Cf)
    cb = params["conv_b"].reshape(1, Cf).astype(jnp.float32)
    lw = jnp.pad(params["lin_w"].T, ((0, 0), (0, Np - OUT))).astype(MM_DTYPE)  # (Cf, Np)
    lb = jnp.pad(params["lin_b"], (0, Np - OUT)).reshape(1, Np).astype(jnp.float32)
    return {"cw": cw, "cb": cb, "lw": lw, "lb": lb}


# ------------------------------ forward pass ------------------------------- #

def visual_extractor_forward(images, prep, *, ksize=4, out_features=121):
    """Returns (patch_feats, avg_feats, images_feature), matching the module."""
    B, Cin, H, W = images.shape
    Ho, Wo = H // ksize, W // ksize
    S = Ho * Wo
    K = Cin * ksize * ksize

    # im2col for stride == ksize (non-overlapping patches): one reshape+transpose,
    # last-dim ordering (Cin, kh, kw) matches conv_w.reshape(Cf, K).
    # NO pad / cast here: both happen once inside the kernel, so the HBM read is
    # the unpadded f32 patches and there is no extra wrapper fusion.
    p = images.reshape(B, Cin, Ho, ksize, Wo, ksize)
    p = jnp.transpose(p, (0, 2, 4, 1, 3, 5))             # (B, Ho, Wo, Cin, k, k)
    patches = p.reshape(B, S, K)

    # All three module outputs come straight out of the kernel — no post-slice ops.
    return pallas_visual_extractor(patches, prep["cw"], prep["cb"],
                                   prep["lw"], prep["lb"],
                                   out_features=out_features)


# --------------------------------- main ------------------------------------ #

if __name__ == "__main__":
    key = jax.random.PRNGKey(0)
    k_img, k_cw, k_cb, k_lw, k_lb = jax.random.split(key, 5)

    B, Cin, H, W = 2, 3, 28, 28          # stem conv k=4, s=4 -> 7x7 feature map
    Cf, OUT = 128, 121                   # Cf stands in for Res2Net fc.in_features

    images = jax.random.normal(k_img, (B, Cin, H, W), jnp.float32)
    params = {
        "conv_w": 0.05 * jax.random.normal(k_cw, (Cf, Cin, 4, 4), jnp.float32),
        "conv_b": 0.05 * jax.random.normal(k_cb, (Cf,), jnp.float32),
        "lin_w":  0.05 * jax.random.normal(k_lw, (OUT, Cf), jnp.float32),  # (out,in) like nn.Linear
        "lin_b":  0.05 * jax.random.normal(k_lb, (OUT,), jnp.float32),
    }

    prep = prepare_params(params)                        # hoisted one-time weight prep
    fwd = jax.jit(visual_extractor_forward)
    patch_feats, avg_feats, images_feature = fwd(images, prep)
    jax.block_until_ready((patch_feats, avg_feats, images_feature))

    # ---- pure-JAX reference: same bf16-rounded MXU operands, f32 accumulation ----
    def _q(a):  # emulate the kernel's bf16 operand rounding
        return a.astype(jnp.bfloat16).astype(jnp.float32)

    conv_ref = jax.lax.conv_general_dilated(
        _q(images), _q(params["conv_w"]), window_strides=(4, 4), padding="VALID",
        dimension_numbers=("NCHW", "OIHW", "NCHW"),
        precision=jax.lax.Precision.HIGHEST,
    ) + params["conv_b"][None, :, None, None]                        # (B, Cf, 7, 7)
    patch_ref = jnp.transpose(conv_ref.reshape(B, Cf, -1), (0, 2, 1))  # (B, 49, Cf)
    avg_ref = jnp.mean(conv_ref, axis=(2, 3))                        # (B, Cf)
    lin_ref = jnp.dot(_q(avg_ref), _q(params["lin_w"]).T,
                      precision=jax.lax.Precision.HIGHEST) + params["lin_b"]

    assert patch_feats.shape == (B, 49, Cf)
    assert avg_feats.shape == (B, Cf)
    assert images_feature.shape == (B, OUT)
    assert jnp.allclose(patch_feats, patch_ref, atol=5e-4), "patch_feats mismatch"
    assert jnp.allclose(avg_feats, avg_ref, atol=5e-4), "avg_feats mismatch"
    assert jnp.allclose(images_feature, lin_ref, atol=2e-3), "images_feature mismatch"

    print("KERNEL_OK")
</pallas_src>

<mosaic_0001>
module attributes {stable_mosaic.version = 11 : i64} {
  func.func @_fused_ve_kernel(%arg0: i32, %arg1: memref<2x49x48xf32, #tpu.memory_space<vmem>>, %arg2: memref<128x128xbf16, #tpu.memory_space<vmem>>, %arg3: memref<1x128xf32, #tpu.memory_space<vmem>>, %arg4: memref<128x128xbf16, #tpu.memory_space<vmem>>, %arg5: memref<1x128xf32, #tpu.memory_space<vmem>>, %arg6: memref<2x49x128xf32, #tpu.memory_space<vmem>>, %arg7: memref<2x128xf32, #tpu.memory_space<vmem>>, %arg8: memref<2x121xf32, #tpu.memory_space<vmem>>, %arg9: memref<2x56x128xf32, #tpu.memory_space<vmem>>) attributes {dimension_semantics = [#tpu.dimension_semantics<arbitrary>], iteration_bounds = array<i64: 1>, scalar_prefetch = 0 : i64, scratch_operands = 1 : i64, tpu.core_type = #tpu.core_type<tc>, window_params = [{pipeline_mode = #tpu.pipeline_mode<synchronous>, transform_indices = @transform_0, window_bounds = array<i64: 2, 49, 48>}, {pipeline_mode = #tpu.pipeline_mode<synchronous>, transform_indices = @transform_1, window_bounds = array<i64: 128, 128>}, {pipeline_mode = #tpu.pipeline_mode<synchronous>, transform_indices = @transform_2, window_bounds = array<i64: 1, 128>}, {pipeline_mode = #tpu.pipeline_mode<synchronous>, transform_indices = @transform_3, window_bounds = array<i64: 128, 128>}, {pipeline_mode = #tpu.pipeline_mode<synchronous>, transform_indices = @transform_4, window_bounds = array<i64: 1, 128>}, {pipeline_mode = #tpu.pipeline_mode<synchronous>, transform_indices = @transform_5, window_bounds = array<i64: 2, 49, 128>}, {pipeline_mode = #tpu.pipeline_mode<synchronous>, transform_indices = @transform_6, window_bounds = array<i64: 2, 128>}, {pipeline_mode = #tpu.pipeline_mode<synchronous>, transform_indices = @transform_7, window_bounds = array<i64: 2, 121>}]} {
    %cst = arith.constant 0.000000e+00 : f32
    %0 = vector.broadcast %cst : f32 to vector<2x56x128xf32>
    %c0 = arith.constant 0 : index
    %c0_0 = arith.constant 0 : index
    %c0_1 = arith.constant 0 : index
    %1 = vector.load %arg9[%c0, %c0_0, %c0_1] : memref<2x56x128xf32, #tpu.memory_space<vmem>>, vector<2x56x128xf32>
    tpu.vector_store %arg9[%c0, %c0_0, %c0_1], %0 {strides = array<i32>} : memref<2x56x128xf32, #tpu.memory_space<vmem>>, vector<2x56x128xf32>,
    %c0_2 = arith.constant 0 : index
    %c0_3 = arith.constant 0 : index
    %c0_4 = arith.constant 0 : index
    %2 = vector.load %arg1[%c0_2, %c0_3, %c0_4] : memref<2x49x48xf32, #tpu.memory_space<vmem>>, vector<2x49x48xf32>
    %c0_5 = arith.constant 0 : index
    %c0_6 = arith.constant 0 : index
    %c0_7 = arith.constant 0 : index
    %3 = vector.load %arg9[%c0_5, %c0_6, %c0_7] : memref<2x56x128xf32, #tpu.memory_space<vmem>>, vector<2x49x48xf32>
    tpu.vector_store %arg9[%c0_5, %c0_6, %c0_7], %2 {strides = array<i32>} : memref<2x56x128xf32, #tpu.memory_space<vmem>>, vector<2x49x48xf32>,
    %c0_8 = arith.constant 0 : index
    %c0_9 = arith.constant 0 : index
    %c0_10 = arith.constant 0 : index
    %4 = vector.load %arg9[%c0_8, %c0_9, %c0_10] : memref<2x56x128xf32, #tpu.memory_space<vmem>>, vector<2x56x128xf32>
    %5 = vector.shape_cast %4 : vector<2x56x128xf32> to vector<112x128xf32>
    %6 = arith.truncf %5 : vector<112x128xf32> to vector<112x128xbf16>
    %c0_11 = arith.constant 0 : index
    %c0_12 = arith.constant 0 : index
    %7 = vector.load %arg2[%c0_11, %c0_12] : memref<128x128xbf16, #tpu.memory_space<vmem>>, vector<128x128xbf16>
    %cst_13 = arith.constant dense<0.000000e+00> : vector<112x128xf32>
    %8 = tpu.matmul %6, %7, %cst_13 {dimension_numbers = #tpu.dot_dimension_numbers<[1], [0], [0], [1], [0, 0, 1, 1], [], []>} : vector<112x128xbf16>, vector<128x128xbf16>, vector<112x128xf32> -> vector<112x128xf32>
    %c0_14 = arith.constant 0 : index
    %c0_15 = arith.constant 0 : index
    %9 = vector.load %arg3[%c0_14, %c0_15] : memref<1x128xf32, #tpu.memory_space<vmem>>, vector<1x128xf32>
    %10 = vector.broadcast %9 : vector<1x128xf32> to vector<112x128xf32>
    %11 = arith.addf %8, %10 : vector<112x128xf32>
    %12 = vector.shape_cast %11 : vector<112x128xf32> to vector<2x56x128xf32>
    %13 = vector.extract_strided_slice %12 {offsets = [0, 0, 0], sizes = [2, 49, 128], strides = [1, 1, 1]} : vector<2x56x128xf32> to vector<2x49x128xf32>
    %c0_16 = arith.constant 0 : index
    %c0_17 = arith.constant 0 : index
    %c0_18 = arith.constant 0 : index
    %14 = vector.load %arg6[%c0_16, %c0_17, %c0_18] : memref<2x49x128xf32, #tpu.memory_space<vmem>>, vector<2x49x128xf32>
    tpu.vector_store %arg6[%c0_16, %c0_17, %c0_18], %13 {strides = array<i32>} : memref<2x49x128xf32, #tpu.memory_space<vmem>>, vector<2x49x128xf32>,
    %cst_19 = arith.constant dense<0.000000e+00> : vector<2x128xf32>
    %15 = vector.multi_reduction <add>, %13, %cst_19 [1] : vector<2x49x128xf32> to vector<2x128xf32>
    %cst_20 = arith.constant 0.0204081628 : f32
    %16 = vector.broadcast %cst_20 : f32 to vector<2x128xf32>
    %17 = arith.mulf %15, %16 : vector<2x128xf32>
    %c0_21 = arith.constant 0 : index
    %c0_22 = arith.constant 0 : index
    %18 = vector.load %arg7[%c0_21, %c0_22] : memref<2x128xf32, #tpu.memory_space<vmem>>, vector<2x128xf32>
    tpu.vector_store %arg7[%c0_21, %c0_22], %17 {strides = array<i32>} : memref<2x128xf32, #tpu.memory_space<vmem>>, vector<2x128xf32>,
    %19 = arith.truncf %17 : vector<2x128xf32> to vector<2x128xbf16>
    %c0_23 = arith.constant 0 : index
    %c0_24 = arith.constant 0 : index
    %20 = vector.load %arg4[%c0_23, %c0_24] : memref<128x128xbf16, #tpu.memory_space<vmem>>, vector<128x128xbf16>
    %cst_25 = arith.constant dense<0.000000e+00> : vector<2x128xf32>
    %21 = tpu.matmul %19, %20, %cst_25 {dimension_numbers = #tpu.dot_dimension_numbers<[1], [0], [0], [1], [0, 0, 1, 1], [], []>} : vector<2x128xbf16>, vector<128x128xbf16>, vector<2x128xf32> -> vector<2x128xf32>
    %c0_26 = arith.constant 0 : index
    %c0_27 = arith.constant 0 : index
    %22 = vector.load %arg5[%c0_26, %c0_27] : memref<1x128xf32, #tpu.memory_space<vmem>>, vector<1x128xf32>
    %23 = vector.broadcast %22 : vector<1x128xf32> to vector<2x128xf32>
    %24 = arith.addf %21, %23 : vector<2x128xf32>
    %25 = vector.extract_strided_slice %24 {offsets = [0, 0], sizes = [2, 121], strides = [1, 1]} : vector<2x128xf32> to vector<2x121xf32>
    %c0_28 = arith.constant 0 : index
    %c0_29 = arith.constant 0 : index
    %26 = vector.load %arg8[%c0_28, %c0_29] : memref<2x121xf32, #tpu.memory_space<vmem>>, vector<2x121xf32>
    tpu.vector_store %arg8[%c0_28, %c0_29], %25 {strides = array<i32>} : memref<2x121xf32, #tpu.memory_space<vmem>>, vector<2x121xf32>,
    return
  }
  func.func @transform_0(%arg0: i32) -> (i32, i32, i32) {
    %c0_i32 = arith.constant 0 : i32
    %c0_i32_0 = arith.constant 0 : i32
    %c0_i32_1 = arith.constant 0 : i32
    %c0_i32_2 = arith.constant 0 : i32
    return %c0_i32, %c0_i32_0, %c0_i32_1 : i32, i32, i32
  }
  func.func @transform_1(%arg0: i32) -> (i32, i32) {
    %c0_i32 = arith.constant 0 : i32
    %c0_i32_0 = arith.constant 0 : i32
    %c0_i32_1 = arith.constant 0 : i32
    return %c0_i32, %c0_i32_0 : i32, i32
  }
  func.func @transform_2(%arg0: i32) -> (i32, i32) {
    %c0_i32 = arith.constant 0 : i32
    %c0_i32_0 = arith.constant 0 : i32
    %c0_i32_1 = arith.constant 0 : i32
    return %c0_i32, %c0_i32_0 : i32, i32
  }
  func.func @transform_3(%arg0: i32) -> (i32, i32) {
    %c0_i32 = arith.constant 0 : i32
    %c0_i32_0 = arith.constant 0 : i32
    %c0_i32_1 = arith.constant 0 : i32
    return %c0_i32, %c0_i32_0 : i32, i32
  }
  func.func @transform_4(%arg0: i32) -> (i32, i32) {
    %c0_i32 = arith.constant 0 : i32
    %c0_i32_0 = arith.constant 0 : i32
    %c0_i32_1 = arith.constant 0 : i32
    return %c0_i32, %c0_i32_0 : i32, i32
  }
  func.func @transform_5(%arg0: i32) -> (i32, i32, i32) {
    %c0_i32 = arith.constant 0 : i32
    %c0_i32_0 = arith.constant 0 : i32
    %c0_i32_1 = arith.constant 0 : i32
    %c0_i32_2 = arith.constant 0 : i32
    return %c0_i32, %c0_i32_0, %c0_i32_1 : i32, i32, i32
  }
  func.func @transform_6(%arg0: i32) -> (i32, i32) {
    %c0_i32 = arith.constant 0 : i32
    %c0_i32_0 = arith.constant 0 : i32
    %c0_i32_1 = arith.constant 0 : i32
    return %c0_i32, %c0_i32_0 : i32, i32
  }
  func.func @transform_7(%arg0: i32) -> (i32, i32) {
    %c0_i32 = arith.constant 0 : i32
    %c0_i32_0 = arith.constant 0 : i32
    %c0_i32_1 = arith.constant 0 : i32
    return %c0_i32, %c0_i32_0 : i32, i32
  }
}

</mosaic_0001>

<llo_original>
// kernel: visual_extractor_forward.1
$region0: #{visual_extractor_forward.1}
  #allocation0 [shape = 'u32[]', space=smem, size = 0x4, offset = 0x4, fixed_abs, tag = 'smem constant byte address 0x4 - core index']
  #allocation1 [shape = 'u32[144,128]{1,0:T(1,128)}', space=vmem, size = 0x12000, scoped, tag = 'internal scratch']
  #allocation2 [shape = 'f32[2,56,128]{2,1,0:T(8,128)}', space=vmem, size = 0xe000, scoped, tag = 'scratch operand']
  %s0 = inlined_call_operand.vmem [shape: f32[2,49,48], index: 0, kind: input, shape index: {}]
  %s1 = inlined_call_operand.vmem [shape: bf16[128,128], index: 1, kind: input, shape index: {}]
  %s2 = inlined_call_operand.vmem [shape: f32[1,128], index: 2, kind: input, shape index: {}]
  %s3 = inlined_call_operand.vmem [shape: bf16[128,128], index: 3, kind: input, shape index: {}]
  %s4 = inlined_call_operand.vmem [shape: f32[1,128], index: 4, kind: input, shape index: {}]
  %s5 = inlined_call_operand.vmem [shape: f32[2,49,128], index: 5, kind: output, shape index: {0}]
  %s6 = inlined_call_operand.hbm [shape: f32[2,128], index: 6, kind: output, shape index: {1}]
  %s7 = inlined_call_operand.hbm [shape: f32[2,121], index: 7, kind: output, shape index: {2}]
  %8 = xla_tuple %s5, %s6, %s7
  %s9 = sld [smem:[#allocation0]]
  $region46: #{visual_extractor_forward.1} parent=0
    _
  %s11 = ssub.s32 1, %s9
  %s12 = scalar_select 0, %s11, %s9
  $region1: #{visual_extractor_forward.1} parent=0
    #allocation3 [shape = 'u8[1024]{0}', space=vmem, size = 0x400, scoped, tag = 'output window, operand 1, single buffered']
    #allocation4 [shape = 's32[1]{0}', space=sflag, size = 0x4, scoped, tag = 'scoped memory for visual_extractor_forward.1']
    #allocation5 [shape = 'u8[1024]{0}', space=vmem, size = 0x400, scoped, tag = 'output window, operand 2, single buffered']
    #allocation6 [shape = 's32[1]{0}', space=sflag, size = 0x4, scoped, tag = 'scoped memory for visual_extractor_forward.1']
    %13 = vsyncpa [#allocation4], 0
    %14 = vsyncpa [#allocation6], 0
    // Predicated region
    $region2: #{visual_extractor_forward.1} parent=1 // pred_check
      _
    $region3: #{visual_extractor_forward.1} parent=1 // pred_check_branch
      %16 = sbr.rel (0) target = $region5
    $region4: #{visual_extractor_forward.1} parent=1 // pred_region
      _
    $region5: #{visual_extractor_forward.1} parent=1 // pred_fallthru
      _
    // Predicated region
    $region6: #{visual_extractor_forward.1} parent=1 // pred_check
      _
    $region7: #{visual_extractor_forward.1} parent=1 // pred_check_branch
      %18 = sbr.rel (0) target = $region9
    $region8: #{visual_extractor_forward.1} parent=1 // pred_region
      _
    $region9: #{visual_extractor_forward.1} parent=1 // pred_fallthru
      _
    // Predicated region
    $region10: #{visual_extractor_forward.1} parent=1 // pred_check
      _
    $region11: #{visual_extractor_forward.1} parent=1 // pred_check_branch
      %20 = sbr.rel (0) target = $region13
    $region12: #{visual_extractor_forward.1} parent=1 // pred_region
      _
    $region13: #{visual_extractor_forward.1} parent=1 // pred_fallthru
      _
    // Predicated region
    $region14: #{visual_extractor_forward.1} parent=1 // pred_check
      _
    $region15: #{visual_extractor_forward.1} parent=1 // pred_check_branch
      %22 = sbr.rel (0) target = $region17
    $region16: #{visual_extractor_forward.1} parent=1 // pred_region
      _
    $region17: #{visual_extractor_forward.1} parent=1 // pred_fallthru
      _
    // Predicated region
    $region18: #{visual_extractor_forward.1} parent=1 // pred_check
      _
    $region19: #{visual_extractor_forward.1} parent=1 // pred_check_branch
      %24 = sbr.rel (0) target = $region21
    $region20: #{visual_extractor_forward.1} parent=1 // pred_region
      _
    $region21: #{visual_extractor_forward.1} parent=1 // pred_fallthru
      _
    %26 = vst [vmem:[#allocation2] sm:$0xff] 0.0
    %27 = vst [vmem:[#allocation2 + $0x8] sm:$0xff] 0.0
    %28 = vst [vmem:[#allocation2 + $0x10] sm:$0xff] 0.0
    %29 = vst [vmem:[#allocation2 + $0x18] sm:$0xff] 0.0
    %30 = vst [vmem:[#allocation2 + $0x20] sm:$0xff] 0.0
    %31 = vst [vmem:[#allocation2 + $0x28] sm:$0xff] 0.0
    %32 = vst [vmem:[#allocation2 + $0x30] sm:$0xff] 0.0
    %33 = vst [vmem:[#allocation2 + $0x38] sm:$0xff] 0.0
    %34 = vst [vmem:[#allocation2 + $0x40] sm:$0xff] 0.0
    %35 = vst [vmem:[#allocation2 + $0x48] sm:$0xff] 0.0
    %36 = vst [vmem:[#allocation2 + $0x50] sm:$0xff] 0.0
    %37 = vst [vmem:[#allocation2 + $0x58] sm:$0xff] 0.0
    %38 = vst [vmem:[#allocation2 + $0x60] sm:$0xff] 0.0
    %39 = vst [vmem:[#allocation2 + $0x68] sm:$0xff] 0.0
    %v40 = vld [vmem:[%s0] sm:$0xff]
    %v41 = vld [vmem:[%s0 + $0x8] sm:$0xff]
    %v42 = vld [vmem:[%s0 + $0x10] sm:$0xff]
    %v43 = vld [vmem:[%s0 + $0x18] sm:$0xff]
    %v44 = vld [vmem:[%s0 + $0x20] sm:$0xff]
    %v45 = vld [vmem:[%s0 + $0x28] sm:$0xff]
    %v46 = vld [vmem:[%s0 + $0x30] sm:$0x1]
    %v47 = vld [vmem:[%s0 + $0x38] sm:$0xff]
    %v48 = vld [vmem:[%s0 + $0x40] sm:$0xff]
    %v49 = vld [vmem:[%s0 + $0x48] sm:$0xff]
    %v50 = vld [vmem:[%s0 + $0x50] sm:$0xff]
    %v51 = vld [vmem:[%s0 + $0x58] sm:$0xff]
    %v52 = vld [vmem:[%s0 + $0x60] sm:$0xff]
    %v53 = vld [vmem:[%s0 + $0x68] sm:$0x1]
    %vm54 = vcmask 392192
    %55 = vst.msk [vmem:[#allocation2] sm:$0xff] %vm54, %v40
    %56 = vst.msk [vmem:[#allocation2 + $0x8] sm:$0xff] %vm54, %v41
    %57 = vst.msk [vmem:[#allocation2 + $0x10] sm:$0xff] %vm54, %v42
    %58 = vst.msk [vmem:[#allocation2 + $0x18] sm:$0xff] %vm54, %v43
    %59 = vst.msk [vmem:[#allocation2 + $0x20] sm:$0xff] %vm54, %v44
    %60 = vst.msk [vmem:[#allocation2 + $0x28] sm:$0xff] %vm54, %v45
    %vm61 = vcmask 385024
    %62 = vst.msk [vmem:[#allocation2 + $0x30] sm:$0x1] %vm61, %v46
    %63 = vst.msk [vmem:[#allocation2 + $0x38] sm:$0xff] %vm54, %v47
    %64 = vst.msk [vmem:[#allocation2 + $0x40] sm:$0xff] %vm54, %v48
    %65 = vst.msk [vmem:[#allocation2 + $0x48] sm:$0xff] %vm54, %v49
    %66 = vst.msk [vmem:[#allocation2 + $0x50] sm:$0xff] %vm54, %v50
    %67 = vst.msk [vmem:[#allocation2 + $0x58] sm:$0xff] %vm54, %v51
    %68 = vst.msk [vmem:[#allocation2 + $0x60] sm:$0xff] %vm54, %v52
    %69 = vst.msk [vmem:[#allocation2 + $0x68] sm:$0x1] %vm61, %v53
    %v70 = vld [vmem:[#allocation2] sm:$0xff]
    %v71 = vld [vmem:[#allocation2 + $0x8] sm:$0xff]
    %v72 = vld [vmem:[#allocation2 + $0x10] sm:$0xff]
    %v73 = vld [vmem:[#allocation2 + $0x18] sm:$0xff]
    %v74 = vld [vmem:[#allocation2 + $0x20] sm:$0xff]
    %v75 = vld [vmem:[#allocation2 + $0x28] sm:$0xff]
    %v76 = vld [vmem:[#allocation2 + $0x30] sm:$0xff]
    %v77 = vld [vmem:[#allocation2 + $0x38] sm:$0xff]
    %v78 = vld [vmem:[#allocation2 + $0x40] sm:$0xff]
    %v79 = vld [vmem:[#allocation2 + $0x48] sm:$0xff]
    %v80 = vld [vmem:[#allocation2 + $0x50] sm:$0xff]
    %v81 = vld [vmem:[#allocation2 + $0x58] sm:$0xff]
    %v82 = vld [vmem:[#allocation2 + $0x60] sm:$0xff]
    %v83 = vld [vmem:[#allocation2 + $0x68] sm:$0xff]
    %v84 = vpack.c.bf16 %v71, %v70
    %v85 = vpack.c.bf16 %v73, %v72
    %v86 = vpack.c.bf16 %v75, %v74
    %v87 = vpack.c.bf16 %v77, %v76
    %v88 = vpack.c.bf16 %v79, %v78
    %v89 = vpack.c.bf16 %v81, %v80
    %v90 = vpack.c.bf16 %v83, %v82
    %v91 = vld [vmem:[%s1] sm:$0xf]
    %v92 = vld [vmem:[%s1 + $0x4] sm:$0xf]
    %v93 = vld [vmem:[%s1 + $0x8] sm:$0xf]
    %v94 = vld [vmem:[%s1 + $0xc] sm:$0xf]
    %v95 = vld [vmem:[%s1 + $0x10] sm:$0xf]
    %v96 = vld [vmem:[%s1 + $0x14] sm:$0xf]
    %v97 = vld [vmem:[%s1 + $0x18] sm:$0xf]
    %v98 = vld [vmem:[%s1 + $0x1c] sm:$0xf]
    %v99 = vld [vmem:[%s1 + $0x20] sm:$0xf]
    %v100 = vld [vmem:[%s1 + $0x24] sm:$0xf]
    %v101 = vld [vmem:[%s1 + $0x28] sm:$0xf]
    %v102 = vld [vmem:[%s1 + $0x2c] sm:$0xf]
    %v103 = vld [vmem:[%s1 + $0x30] sm:$0xf]
    %v104 = vld [vmem:[%s1 + $0x34] sm:$0xf]
    %v105 = vld [vmem:[%s1 + $0x38] sm:$0xf]
    %v106 = vld [vmem:[%s1 + $0x3c] sm:$0xf]
    %v107 = vld [vmem:[%s2] sm:$0x1]
    %v109 = vlaneseq
    %v110 = vshrl.u32 %v109, 7
    %v111 = vsub.s32 0, %v110
    %v112 = vrot.slane %v107, %v111
    %v130 = vunpack.c.l.b16 %v91
    %v131 = vunpack.c.l.b16 %v92
    %v132 = vunpack.c.l.b16 %v93
    %v133 = vunpack.c.l.b16 %v94
    %v134 = vunpack.c.l.b16 %v95
    %v135 = vunpack.c.l.b16 %v96
    %v136 = vunpack.c.l.b16 %v97
    %v137 = vunpack.c.l.b16 %v98
    %v138 = vunpack.c.l.b16 %v99
    %v139 = vunpack.c.l.b16 %v100
    %v140 = vunpack.c.l.b16 %v101
    %v141 = vunpack.c.l.b16 %v102
    %v142 = vunpack.c.l.b16 %v103
    %v143 = vunpack.c.l.b16 %v104
    %v144 = vunpack.c.l.b16 %v105
    %v145 = vunpack.c.l.b16 %v106
    %v146 = vpack.c.b16 %v131, %v130
    %v147 = vpack.c.b16 %v133, %v132
    %v148 = vpack.c.b16 %v135, %v134
    %v149 = vpack.c.b16 %v137, %v136
    %v150 = vpack.c.b16 %v139, %v138
    %v151 = vpack.c.b16 %v141, %v140
    %v152 = vpack.c.b16 %v143, %v142
    %v153 = vpack.c.b16 %v145, %v144
    %162 = vmatprep.subr.bf16.mxu0 0
    %163 = vmatpush1.bf16.msra.mxu0 %v146
    %164 = vmatprep.subr.bf16.mxu0 0
    %165 = vmatpush1.bf16.msra.mxu0 %v147
    %166 = vmatprep.subr.bf16.mxu0 0
    %167 = vmatpush1.bf16.msra.mxu0 %v148
    %168 = vmatprep.subr.bf16.mxu0 0
    %169 = vmatpush1.bf16.msra.mxu0 %v149
    %170 = vmatprep.subr.bf16.mxu0 0
    %171 = vmatpush1.bf16.msra.mxu0 %v150
    %172 = vmatprep.subr.bf16.mxu0 0
    %173 = vmatpush1.bf16.msra.mxu0 %v151
    %174 = vmatprep.subr.bf16.mxu0 0
    %175 = vmatpush1.bf16.msra.mxu0 %v152
    %176 = vmatprep.subr.bf16.mxu0 0
    %177 = vmatpush1.bf16.msra.mxu0 %v153
    %178 = vmatprep.subr.bf16.mxu0 0
    %179 = vmatpush1.bf16.msra.mxu0 0
    %180 = vmatprep.subr.bf16.mxu0 0
    %181 = vmatpush1.bf16.msra.mxu0 0
    %182 = vmatprep.subr.bf16.mxu0 0
    %183 = vmatpush1.bf16.msra.mxu0 0
    %184 = vmatprep.subr.bf16.mxu0 0
    %185 = vmatpush1.bf16.msra.mxu0 0
    %186 = vmatprep.subr.bf16.mxu0 0
    %187 = vmatpush1.bf16.msra.mxu0 0
    %188 = vmatprep.subr.bf16.mxu0 0
    %189 = vmatpush1.bf16.msra.mxu0 0
    %190 = vmatprep.subr.bf16.mxu0 0
    %191 = vmatpush1.bf16.msra.mxu0 0
    %192 = vmatprep.subr.bf16.mxu0 0
    %193 = vmatpush1.bf16.msra.mxu0 0
    %194 = vmatprep.mubr.bf16.mxu0 0
    %195 = vmatmul.mubr.bf16.gmra.mrb[0].mxu0 %v84
    %v196 = vpop.f32.mrb[0].mxu0
    %v197 = vadd.f32 %v112, %v196
    %v198 = vpop.f32.mrb[0].mxu0
    %v199 = vpop.f32.mrb[0].mxu0
    %v200 = vadd.f32 %v112, %v199
    %v201 = vpop.f32.mrb[0].mxu0
    %202 = vmatprep.mubr.bf16.mxu0 0
    %203 = vmatmul.mubr.bf16.gmra.mrb[0].mxu0 %v85
    %v204 = vpop.f32.mrb[0].mxu0
    %v205 = vadd.f32 %v112, %v204
    %v206 = vpop.f32.mrb[0].mxu0
    %v207 = vpop.f32.mrb[0].mxu0
    %v208 = vadd.f32 %v112, %v207
    %v209 = vpop.f32.mrb[0].mxu0
    %210 = vmatprep.mubr.bf16.mxu0 0
    %211 = vmatmul.mubr.bf16.gmra.mrb[0].mxu0 %v86
    %v212 = vpop.f32.mrb[0].mxu0
    %v213 = vadd.f32 %v112, %v212
    %v214 = vpop.f32.mrb[0].mxu0
    %v215 = vpop.f32.mrb[0].mxu0
    %v216 = vadd.f32 %v112, %v215
    %v217 = vpop.f32.mrb[0].mxu0
    %218 = vmatprep.mubr.bf16.mxu0 0
    %219 = vmatmul.mubr.bf16.gmra.mrb[0].mxu0 %v87
    %v220 = vpop.f32.mrb[0].mxu0
    %v221 = vadd.f32 %v112, %v220
    %v222 = vpop.f32.mrb[0].mxu0
    %v223 = vpop.f32.mrb[0].mxu0
    %v224 = vadd.f32 %v112, %v223
    %v225 = vpop.f32.mrb[0].mxu0
    %226 = vmatprep.mubr.bf16.mxu0 0
    %227 = vmatmul.mubr.bf16.gmra.mrb[0].mxu0 %v88
    %v228 = vpop.f32.mrb[0].mxu0
    %v229 = vadd.f32 %v112, %v228
    %v230 = vpop.f32.mrb[0].mxu0
    %v231 = vpop.f32.mrb[0].mxu0
    %v232 = vadd.f32 %v112, %v231
    %v233 = vpop.f32.mrb[0].mxu0
    %234 = vmatprep.mubr.bf16.mxu0 0
    %235 = vmatmul.mubr.bf16.gmra.mrb[0].mxu0 %v89
    %v236 = vpop.f32.mrb[0].mxu0
    %v237 = vadd.f32 %v112, %v236
    %v238 = vpop.f32.mrb[0].mxu0
    %v239 = vpop.f32.mrb[0].mxu0
    %v240 = vadd.f32 %v112, %v239
    %v241 = vpop.f32.mrb[0].mxu0
    %242 = vmatprep.mubr.bf16.mxu0 0
    %243 = vmatmul.mubr.bf16.gmra.mrb[0].mxu0 %v90
    %v244 = vpop.f32.mrb[0].mxu0
    %v245 = vadd.f32 %v112, %v244
    %v246 = vpop.f32.mrb[0].mxu0
    %v247 = vpop.f32.mrb[0].mxu0
    %v248 = vadd.f32 %v112, %v247
    %v249 = vpop.f32.mrb[0].mxu0
    %250 = vdwg.mxu0
    %251 = vst [vmem:[%s5] sm:$0xff] %v197
    %252 = vst [vmem:[%s5 + $0x8] sm:$0xff] %v200
    %253 = vst [vmem:[%s5 + $0x10] sm:$0xff] %v205
    %254 = vst [vmem:[%s5 + $0x18] sm:$0xff] %v208
    %255 = vst [vmem:[%s5 + $0x20] sm:$0xff] %v213
    %256 = vst [vmem:[%s5 + $0x28] sm:$0xff] %v216
    %257 = vst [vmem:[%s5 + $0x30] sm:$0x1] %v221
    %258 = vst [vmem:[%s5 + $0x38] sm:$0xff] %v224
    %259 = vst [vmem:[%s5 + $0x40] sm:$0xff] %v229
    %260 = vst [vmem:[%s5 + $0x48] sm:$0xff] %v232
    %261 = vst [vmem:[%s5 + $0x50] sm:$0xff] %v237
    %262 = vst [vmem:[%s5 + $0x58] sm:$0xff] %v240
    %263 = vst [vmem:[%s5 + $0x60] sm:$0xff] %v245
    %264 = vst [vmem:[%s5 + $0x68] sm:$0x1] %v248
    %v265 = vadd.f32 %v197, %v200
    %v266 = vadd.f32 %v265, %v205
    %v267 = vadd.f32 %v266, %v208
    %v268 = vadd.f32 %v267, %v213
    %v269 = vadd.f32 %v268, %v216
    %vm270 = vcmask 1040384
    %v271 = vsel %vm270, %v221, 0.0
    %v272 = vadd.f32 %v269, %v271
    %v273 = vrot.slane %v272, 4
    %v274 = vadd.f32 %v272, %v273
    %v275 = vrot.slane %v274, 2
    %v276 = vadd.f32 %v274, %v275
    %v277 = vrot.slane %v276, 1
    %v278 = vadd.f32 %v276, %v277
    %v279 = vadd.f32 %v224, %v229
    %v280 = vadd.f32 %v279, %v232
    %v281 = vadd.f32 %v280, %v237
    %v282 = vadd.f32 %v281, %v240
    %v283 = vadd.f32 %v282, %v245
    %v284 = vsel %vm270, %v248, 0.0
    %v285 = vadd.f32 %v283, %v284
    %v286 = vrot.slane %v285, 4
    %v287 = vadd.f32 %v285, %v286
    %v288 = vrot.slane %v287, 2
    %v289 = vadd.f32 %v287, %v288
    %v290 = vrot.slane %v289, 1
    %v291 = vadd.f32 %v289, %v290
    %v292 = vmul.f32 %v278, 0.020408163
    %v293 = vmul.f32 %v291, 0.020408163
    %vm296 = vcmask 1041409
    %v297 = vsel %vm296, %v293, %v292
    %299 = vst [vmem:[#allocation3] sm:$0x3] %v297
    %v300 = vpack.c.bf16 %v292, %v292
    %v301 = vpack.c.bf16 %v293, %v293
    %v302 = vld [vmem:[%s3] sm:$0xf]
    %v303 = vld [vmem:[%s3 + $0x4] sm:$0xf]
    %v304 = vld [vmem:[%s3 + $0x8] sm:$0xf]
    %v305 = vld [vmem:[%s3 + $0xc] sm:$0xf]
    %v306 = vld [vmem:[%s3 + $0x10] sm:$0xf]
    %v307 = vld [vmem:[%s3 + $0x14] sm:$0xf]
    %v308 = vld [vmem:[%s3 + $0x18] sm:$0xf]
    %v309 = vld [vmem:[%s3 + $0x1c] sm:$0xf]
    %v310 = vld [vmem:[%s3 + $0x20] sm:$0xf]
    %v311 = vld [vmem:[%s3 + $0x24] sm:$0xf]
    %v312 = vld [vmem:[%s3 + $0x28] sm:$0xf]
    %v313 = vld [vmem:[%s3 + $0x2c] sm:$0xf]
    %v314 = vld [vmem:[%s3 + $0x30] sm:$0xf]
    %v315 = vld [vmem:[%s3 + $0x34] sm:$0xf]
    %v316 = vld [vmem:[%s3 + $0x38] sm:$0xf]
    %v317 = vld [vmem:[%s3 + $0x3c] sm:$0xf]
    %v318 = vld [vmem:[%s4] sm:$0x1]
    %v320 = vlaneseq
    %v321 = vshrl.u32 %v320, 7
    %v322 = vsub.s32 0, %v321
    %v323 = vrot.slane %v318, %v322
    %v327 = vunpack.c.l.b16 %v300
    %v328 = vunpack.c.l.b16 %v301
    %v329 = vsel %vm296, %v328, %v327
    %v330 = vpack.c.b16 %v329, %v329
    %v348 = vunpack.c.l.b16 %v302
    %v349 = vunpack.c.l.b16 %v303
    %v350 = vunpack.c.l.b16 %v304
    %v351 = vunpack.c.l.b16 %v305
    %v352 = vunpack.c.l.b16 %v306
    %v353 = vunpack.c.l.b16 %v307
    %v354 = vunpack.c.l.b16 %v308
    %v355 = vunpack.c.l.b16 %v309
    %v356 = vunpack.c.l.b16 %v310
    %v357 = vunpack.c.l.b16 %v311
    %v358 = vunpack.c.l.b16 %v312
    %v359 = vunpack.c.l.b16 %v313
    %v360 = vunpack.c.l.b16 %v314
    %v361 = vunpack.c.l.b16 %v315
    %v362 = vunpack.c.l.b16 %v316
    %v363 = vunpack.c.l.b16 %v317
    %v364 = vpack.c.b16 %v349, %v348
    %v365 = vpack.c.b16 %v351, %v350
    %v366 = vpack.c.b16 %v353, %v352
    %v367 = vpack.c.b16 %v355, %v354
    %v368 = vpack.c.b16 %v357, %v356
    %v369 = vpack.c.b16 %v359, %v358
    %v370 = vpack.c.b16 %v361, %v360
    %v371 = vpack.c.b16 %v363, %v362
    %380 = vmatprep.subr.bf16.mxu0 0
    %381 = vmatpush1.bf16.msra.mxu0 %v364
    %382 = vmatprep.subr.bf16.mxu0 0
    %383 = vmatpush1.bf16.msra.mxu0 %v365
    %384 = vmatprep.subr.bf16.mxu0 0
    %385 = vmatpush1.bf16.msra.mxu0 %v366
    %386 = vmatprep.subr.bf16.mxu0 0
    %387 = vmatpush1.bf16.msra.mxu0 %v367
    %388 = vmatprep.subr.bf16.mxu0 0
    %389 = vmatpush1.bf16.msra.mxu0 %v368
    %390 = vmatprep.subr.bf16.mxu0 0
    %391 = vmatpush1.bf16.msra.mxu0 %v369
    %392 = vmatprep.subr.bf16.mxu0 0
    %393 = vmatpush1.bf16.msra.mxu0 %v370
    %394 = vmatprep.subr.bf16.mxu0 0
    %395 = vmatpush1.bf16.msra.mxu0 %v371
    %396 = vmatprep.subr.bf16.mxu0 0
    %397 = vmatpush1.bf16.msra.mxu0 0
    %398 = vmatprep.subr.bf16.mxu0 0
    %399 = vmatpush1.bf16.msra.mxu0 0
    %400 = vmatprep.subr.bf16.mxu0 0
    %401 = vmatpush1.bf16.msra.mxu0 0
    %402 = vmatprep.subr.bf16.mxu0 0
    %403 = vmatpush1.bf16.msra.mxu0 0
    %404 = vmatprep.subr.bf16.mxu0 0
    %405 = vmatpush1.bf16.msra.mxu0 0
    %406 = vmatprep.subr.bf16.mxu0 0
    %407 = vmatpush1.bf16.msra.mxu0 0
    %408 = vmatprep.subr.bf16.mxu0 0
    %409 = vmatpush1.bf16.msra.mxu0 0
    %410 = vmatprep.subr.bf16.mxu0 0
    %411 = vmatpush1.bf16.msra.mxu0 0
    %412 = vmatprep.mubr.bf16.mxu0 0
    %413 = vmatmul.mubr.bf16.gmra.mrb[0].mxu0 %v330
    %v414 = vpop.f32.mrb[0].mxu0
    %v415 = vadd.f32 %v323, %v414
    %v416 = vpop.f32.mrb[0].mxu0
    %v417 = vpop.f32.mrb[0].mxu0
    %v418 = vpop.f32.mrb[0].mxu0
    %419 = vdwg.mxu0
    %vm420 = vcmask 984064
    %421 = vst.msk [vmem:[#allocation5] sm:$0x3] %vm420, %v415
    // Predicated region
    $region22: #{visual_extractor_forward.1} parent=1 // pred_check
      _
    $region23: #{visual_extractor_forward.1} parent=1 // pred_check_branch
      %423 = sbr.rel (0) target = $region25
    $region24: #{visual_extractor_forward.1} parent=1 // pred_region
      _
    $region25: #{visual_extractor_forward.1} parent=1 // pred_fallthru
      _
    // Predicated region
    $region26: #{visual_extractor_forward.1} parent=1 // pred_check
      _
    $region27: #{visual_extractor_forward.1} parent=1 // pred_check_branch
      %425 = sbr.rel (0) target = $region29
    $region28: #{visual_extractor_forward.1} parent=1 // pred_region
      %s427 = ssub.s32 32, 32
      %428 = vsyncadd [#allocation4], %s427
      %s430 = sshll.u32 [#allocation3], 4
      %s431 = int_to_ptr.vmem [resolvable:$true] %s430
      %433 = dma.vmem_to_hbm [thread:$0]  %s431, 32, %s6, [#allocation4]
    $region29: #{visual_extractor_forward.1} parent=1 // pred_fallthru
      _
    // Predicated region
    $region30: #{visual_extractor_forward.1} parent=1 // pred_check
      _
    $region31: #{visual_extractor_forward.1} parent=1 // pred_check_branch
      %435 = sbr.rel (0) target = $region33
    $region32: #{visual_extractor_forward.1} parent=1 // pred_region
      %s437 = ssub.s32 32, 32
      %438 = vsyncadd [#allocation6], %s437
      %s440 = sshll.u32 [#allocation5], 4
      %s441 = int_to_ptr.vmem [resolvable:$true] %s440
      %443 = dma.vmem_to_hbm [thread:$0]  %s441, 32, %s7, [#allocation6]
    $region33: #{visual_extractor_forward.1} parent=1 // pred_fallthru
      _
    // Predicated region
    $region34: #{visual_extractor_forward.1} parent=1 // pred_check
      _
    $region35: #{visual_extractor_forward.1} parent=1 // pred_check_branch
      %445 = sbr.rel (0) target = $region37
    $region36: #{visual_extractor_forward.1} parent=1 // pred_region
      _
    $region37: #{visual_extractor_forward.1} parent=1 // pred_fallthru
      _
    // Predicated region
    $region38: #{visual_extractor_forward.1} parent=1 // pred_check
      _
    $region39: #{visual_extractor_forward.1} parent=1 // pred_check_branch
      %447 = sbr.rel (0) target = $region41
    $region40: #{visual_extractor_forward.1} parent=1 // pred_region
      %448 = dma.done [#allocation4], 32
    $region41: #{visual_extractor_forward.1} parent=1 // pred_fallthru
      _
    // Predicated region
    $region42: #{visual_extractor_forward.1} parent=1 // pred_check
      _
    $region43: #{visual_extractor_forward.1} parent=1 // pred_check_branch
      %450 = sbr.rel (0) target = $region45
    $region44: #{visual_extractor_forward.1} parent=1 // pred_region
      %451 = dma.done [#allocation6], 32
    $region45: #{visual_extractor_forward.1} parent=1 // pred_fallthru
      _
    %452 = vsyncpa [#allocation4], 1
    %453 = vsyncpa [#allocation6], 1

</llo_original>
